<compile_context>
chip_gen: v6e
topology: v6e:2x2x1
jax: 0.10.0
libtpu: 0.0.40
codegen_flags: <defaults>
</compile_context>

<pallas_src>
import jax
import jax.numpy as jnp
from jax import lax
from jax.experimental import pallas as pl
from jax.experimental.pallas import tpu as pltpu

NEG_SLOPE = 0.01  # PyTorch nn.LeakyReLU default negative_slope


def _leaky_relu(h):
    # max(h, slope*h) == where(h > 0, h, slope*h) for 0 < slope < 1; one VALU op cheaper.
    return jnp.maximum(h, NEG_SLOPE * h)


def _round_up(n, m):
    return ((n + m - 1) // m) * m


def _cdiv(a, b):
    return -(-a // b)


def mlp_kernel(x_ref, w1_ref, b1_ref, w2_ref, b2_ref, w3t_ref, b3_ref, o_ref):
    # x_ref  : (TILE_B, D)  natural batch-major layout (no host transpose)
    # w1_ref : (H, D)   b1_ref: (H, 1)
    # w2_ref : (H, H)   b2_ref: (H, 1)
    # w3t_ref: (1, H)   b3_ref: (1, 1) in SMEM
    # o_ref  : (1, TILE_B)  lane-dense output row (batch on the lane axis)

    # fc1 + LeakyReLU: contract both operands on D -> feature-major (H, TILE_B).
    h1 = lax.dot_general(
        w1_ref[...], x_ref[...], (((1,), (1,)), ((), ())),
        preferred_element_type=jnp.float32) + b1_ref[...]
    h1 = _leaky_relu(h1)

    # fc2 + LeakyReLU:  h2 = W2 @ h1 + b2
    h2 = jnp.dot(w2_ref[...], h1, preferred_element_type=jnp.float32) + b2_ref[...]
    h2 = _leaky_relu(h2)

    # fc3 (N=1) on the MXU (huge slack at these dims): (1,H)@(H,TILE_B) -> (1, TILE_B).
    out = jnp.dot(w3t_ref[...], h2, preferred_element_type=jnp.float32) + b3_ref[0, 0]
    o_ref[...] = out.astype(o_ref.dtype)


def _pick_tile_b(B, D, H, vmem_limit_bytes, max_tile_b):
    """Largest lane-aligned batch tile fitting the VMEM budget (>=2 tiles if B >= 256)."""
    # Rough per-row f32 footprint: double-buffered x tile + double-buffered
    # (sublane-padded) output row + h1/h2 VMEM temporaries. Weights are negligible.
    bytes_per_row = 4 * (2 * D + 2 * 8 + 2 * H)
    budget_rows = max((vmem_limit_bytes // 2) // bytes_per_row, 128)

    tile_b = _round_up(max(B, 1), 128)
    if B >= 256:
        # Keep >= 2 grid steps so the "parallel" axis can use both v7x TensorCores.
        tile_b = min(tile_b, _round_up(_cdiv(B, 2), 128))
    tile_b = min(tile_b, max_tile_b, (budget_rows // 128) * 128)
    return max(tile_b, 128)


def regression_model_forward(x, params, *, max_tile_b=16384):
    """x: (B, input_size) float32.  Params use PyTorch nn.Linear layout."""
    B, D = x.shape
    H = params["w1"].shape[0]

    # VMEM limit ~3/4 of physical (v7x: 64 MiB/TC -> 48 MiB; v5e/v6e: 128 MiB -> 96 MiB).
    try:
        vmem_cap = pltpu.get_tpu_info().vmem_capacity_bytes
    except Exception:
        vmem_cap = 64 * 1024 * 1024  # conservative default: v7x per-TensorCore VMEM
    vmem_limit = int(min((vmem_cap * 3) // 4, 100 * 1024 * 1024))

    tile_b = _pick_tile_b(B, D, H, vmem_limit, max_tile_b)
    n_tiles = _cdiv(B, tile_b)   # last x block is a partial copy; no host-side pad
    b_pad = n_tiles * tile_b

    x = x.astype(jnp.float32)
    w3t = params["w3"].reshape(1, H)  # (H, 1) column -> (1, H) row for the MXU matmul

    # TODO(synk): optional bf16 MXU-operand path (halves the x HBM stream on v6e/v7x);
    #   kept f32 to match the PyTorch reference numerics exactly.
    # TODO(synk): pipeline_mode=pl.Buffered(1) on the weight specs would halve their
    #   (already tiny at H=32) double-buffered VMEM footprint if hidden_units grows.
    out_t = pl.pallas_call(
        mlp_kernel,
        out_shape=jax.ShapeDtypeStruct((1, b_pad), jnp.float32),
        grid=(n_tiles,),
        in_specs=[
            pl.BlockSpec((tile_b, D), lambda i: (i, 0)),        # x tile (pipelined)
            pl.BlockSpec((H, D), lambda i: (0, 0)),             # w1 (VMEM-resident)
            pl.BlockSpec((H, 1), lambda i: (0, 0)),             # b1
            pl.BlockSpec((H, H), lambda i: (0, 0)),             # w2
            pl.BlockSpec((H, 1), lambda i: (0, 0)),             # b2
            pl.BlockSpec((1, H), lambda i: (0, 0)),             # w3^T (row)
            pl.BlockSpec(memory_space=pltpu.MemorySpace.SMEM),  # b3 scalar
        ],
        out_specs=pl.BlockSpec((1, tile_b), lambda i: (0, i)),
        compiler_params=pltpu.CompilerParams(
            dimension_semantics=("parallel",),
            vmem_limit_bytes=vmem_limit,
        ),
    )(x, params["w1"], params["b1"], params["w2"], params["b2"], w3t, params["b3"])

    return out_t[0, :B].reshape(B, 1)


def init_params(key, input_size, hidden_units):
    """Deterministic init mirroring nn.Linear's U(-1/sqrt(fan_in), 1/sqrt(fan_in))."""
    ks = jax.random.split(key, 6)

    def uniform(k, shape, fan_in):
        bound = 1.0 / jnp.sqrt(jnp.float32(fan_in))
        return jax.random.uniform(k, shape, jnp.float32, -bound, bound)

    return {
        "w1": uniform(ks[0], (hidden_units, input_size), input_size),      # (H, D)
        "b1": uniform(ks[1], (hidden_units, 1), input_size),               # (H, 1)
        "w2": uniform(ks[2], (hidden_units, hidden_units), hidden_units),  # (H, H)
        "b2": uniform(ks[3], (hidden_units, 1), hidden_units),             # (H, 1)
        "w3": uniform(ks[4], (hidden_units, 1), hidden_units),             # (H, 1) == W3^T
        "b3": uniform(ks[5], (1, 1), hidden_units),                        # (1, 1)
    }


def reference_forward(x, p):
    h1 = _leaky_relu(x @ p["w1"].T + p["b1"].T)
    h2 = _leaky_relu(h1 @ p["w2"].T + p["b2"].T)
    return h2 @ p["w3"] + p["b3"]


if __name__ == "__main__":
    key = jax.random.PRNGKey(0)
    k_param, k_x = jax.random.split(key)

    batch = 8
    input_size = 16
    hidden_units = 32

    params = init_params(k_param, input_size, hidden_units)
    x = jax.random.normal(k_x, (batch, input_size), jnp.float32)

    out = regression_model_forward(x, params)
    out = jax.block_until_ready(out)

    ref = reference_forward(x, params)
    assert out.shape == (batch, 1), out.shape
    assert jnp.allclose(out, ref, atol=1e-3, rtol=1e-3), "mismatch vs JAX reference"

    print("KERNEL_OK")
</pallas_src>

<mosaic_0001>
module attributes {stable_mosaic.version = 11 : i64} {
  func.func @mlp_kernel(%arg0: i32, %arg1: memref<128x16xf32, #tpu.memory_space<vmem>>, %arg2: memref<32x16xf32, #tpu.memory_space<vmem>>, %arg3: memref<32x1xf32, #tpu.memory_space<vmem>>, %arg4: memref<32x32xf32, #tpu.memory_space<vmem>>, %arg5: memref<32x1xf32, #tpu.memory_space<vmem>>, %arg6: memref<1x32xf32, #tpu.memory_space<vmem>>, %arg7: memref<1x1xf32, #tpu.memory_space<smem>>, %arg8: memref<1x128xf32, #tpu.memory_space<vmem>>) attributes {dimension_semantics = [#tpu.dimension_semantics<parallel>], iteration_bounds = array<i64: 1>, scalar_prefetch = 0 : i64, scratch_operands = 0 : i64, tpu.core_type = #tpu.core_type<tc>, window_params = [{transform_indices = @transform_0, window_bounds = array<i64: 128, 16>}, {pipeline_mode = #tpu.pipeline_mode<synchronous>, transform_indices = @transform_1, window_bounds = array<i64: 32, 16>}, {pipeline_mode = #tpu.pipeline_mode<synchronous>, transform_indices = @transform_2, window_bounds = array<i64: 32, 1>}, {pipeline_mode = #tpu.pipeline_mode<synchronous>, transform_indices = @transform_3, window_bounds = array<i64: 32, 32>}, {pipeline_mode = #tpu.pipeline_mode<synchronous>, transform_indices = @transform_4, window_bounds = array<i64: 32, 1>}, {pipeline_mode = #tpu.pipeline_mode<synchronous>, transform_indices = @transform_5, window_bounds = array<i64: 1, 32>}, {transform_indices = @transform_6, window_bounds = array<i64: 1, 1>}, {transform_indices = @transform_7, window_bounds = array<i64: 1, 128>}]} {
    %c0 = arith.constant 0 : index
    %c0_0 = arith.constant 0 : index
    %0 = vector.load %arg2[%c0, %c0_0] : memref<32x16xf32, #tpu.memory_space<vmem>>, vector<32x16xf32>
    %c0_1 = arith.constant 0 : index
    %c0_2 = arith.constant 0 : index
    %1 = vector.load %arg1[%c0_1, %c0_2] : memref<128x16xf32, #tpu.memory_space<vmem>>, vector<128x16xf32>
    %cst = arith.constant dense<0.000000e+00> : vector<32x128xf32>
    %2 = tpu.matmul %0, %1, %cst {dimension_numbers = #tpu.dot_dimension_numbers<[1], [1], [0], [0], [0, 0, 1, 0], [], []>} : vector<32x16xf32>, vector<128x16xf32>, vector<32x128xf32> -> vector<32x128xf32>
    %c0_3 = arith.constant 0 : index
    %c0_4 = arith.constant 0 : index
    %3 = vector.load %arg3[%c0_3, %c0_4] : memref<32x1xf32, #tpu.memory_space<vmem>>, vector<32x1xf32>
    %4 = vector.broadcast %3 : vector<32x1xf32> to vector<32x128xf32>
    %5 = arith.addf %2, %4 : vector<32x128xf32>
    %cst_5 = arith.constant 0.00999999977 : f32
    %6 = vector.broadcast %cst_5 : f32 to vector<32x128xf32>
    %7 = arith.mulf %6, %5 : vector<32x128xf32>
    %8 = arith.maximumf %5, %7 : vector<32x128xf32>
    %c0_6 = arith.constant 0 : index
    %c0_7 = arith.constant 0 : index
    %9 = vector.load %arg4[%c0_6, %c0_7] : memref<32x32xf32, #tpu.memory_space<vmem>>, vector<32x32xf32>
    %cst_8 = arith.constant dense<0.000000e+00> : vector<32x128xf32>
    %10 = tpu.matmul %9, %8, %cst_8 {dimension_numbers = #tpu.dot_dimension_numbers<[1], [0], [0], [1], [0, 0, 1, 1], [], []>} : vector<32x32xf32>, vector<32x128xf32>, vector<32x128xf32> -> vector<32x128xf32>
    %c0_9 = arith.constant 0 : index
    %c0_10 = arith.constant 0 : index
    %11 = vector.load %arg5[%c0_9, %c0_10] : memref<32x1xf32, #tpu.memory_space<vmem>>, vector<32x1xf32>
    %12 = vector.broadcast %11 : vector<32x1xf32> to vector<32x128xf32>
    %13 = arith.addf %10, %12 : vector<32x128xf32>
    %cst_11 = arith.constant 0.00999999977 : f32
    %14 = vector.broadcast %cst_11 : f32 to vector<32x128xf32>
    %15 = arith.mulf %14, %13 : vector<32x128xf32>
    %16 = arith.maximumf %13, %15 : vector<32x128xf32>
    %c0_12 = arith.constant 0 : index
    %c0_13 = arith.constant 0 : index
    %17 = vector.load %arg6[%c0_12, %c0_13] : memref<1x32xf32, #tpu.memory_space<vmem>>, vector<1x32xf32>
    %cst_14 = arith.constant dense<0.000000e+00> : vector<1x128xf32>
    %18 = tpu.matmul %17, %16, %cst_14 {dimension_numbers = #tpu.dot_dimension_numbers<[1], [0], [0], [1], [0, 0, 1, 1], [], []>} : vector<1x32xf32>, vector<32x128xf32>, vector<1x128xf32> -> vector<1x128xf32>
    %c0_15 = arith.constant 0 : index
    %c0_16 = arith.constant 0 : index
    %19 = memref.load %arg7[%c0_15, %c0_16] : memref<1x1xf32, #tpu.memory_space<smem>>
    %20 = vector.broadcast %19 : f32 to vector<1x128xf32>
    %21 = arith.addf %18, %20 : vector<1x128xf32>
    %c0_17 = arith.constant 0 : index
    %c0_18 = arith.constant 0 : index
    %22 = vector.load %arg8[%c0_17, %c0_18] : memref<1x128xf32, #tpu.memory_space<vmem>>, vector<1x128xf32>
    tpu.vector_store %arg8[%c0_17, %c0_18], %21 {strides = array<i32>} : memref<1x128xf32, #tpu.memory_space<vmem>>, vector<1x128xf32>,
    return
  }
  func.func @transform_0(%arg0: i32) -> (i32, i32) {
    %c0_i32 = arith.constant 0 : i32
    %c0_i32_0 = arith.constant 0 : i32
    return %arg0, %c0_i32 : i32, i32
  }
  func.func @transform_1(%arg0: i32) -> (i32, i32) {
    %c0_i32 = arith.constant 0 : i32
    %c0_i32_0 = arith.constant 0 : i32
    %c0_i32_1 = arith.constant 0 : i32
    return %c0_i32, %c0_i32_0 : i32, i32
  }
  func.func @transform_2(%arg0: i32) -> (i32, i32) {
    %c0_i32 = arith.constant 0 : i32
    %c0_i32_0 = arith.constant 0 : i32
    %c0_i32_1 = arith.constant 0 : i32
    return %c0_i32, %c0_i32_0 : i32, i32
  }
  func.func @transform_3(%arg0: i32) -> (i32, i32) {
    %c0_i32 = arith.constant 0 : i32
    %c0_i32_0 = arith.constant 0 : i32
    %c0_i32_1 = arith.constant 0 : i32
    return %c0_i32, %c0_i32_0 : i32, i32
  }
  func.func @transform_4(%arg0: i32) -> (i32, i32) {
    %c0_i32 = arith.constant 0 : i32
    %c0_i32_0 = arith.constant 0 : i32
    %c0_i32_1 = arith.constant 0 : i32
    return %c0_i32, %c0_i32_0 : i32, i32
  }
  func.func @transform_5(%arg0: i32) -> (i32, i32) {
    %c0_i32 = arith.constant 0 : i32
    %c0_i32_0 = arith.constant 0 : i32
    %c0_i32_1 = arith.constant 0 : i32
    return %c0_i32, %c0_i32_0 : i32, i32
  }
  func.func @transform_6(%arg0: i32) -> (i32, i32) {
    %c0_i32 = arith.constant 0 : i32
    %c0_i32_0 = arith.constant 0 : i32
    %c0_i32_1 = arith.constant 0 : i32
    return %c0_i32, %c0_i32_0 : i32, i32
  }
  func.func @transform_7(%arg0: i32) -> (i32, i32) {
    %c0_i32 = arith.constant 0 : i32
    %c0_i32_0 = arith.constant 0 : i32
    return %c0_i32, %arg0 : i32, i32
  }
}

</mosaic_0001>

<llo_original>
// kernel: tpu_custom_call.1
$region0: #{tpu_custom_call.1}
  #allocation0 [shape = 'u32[]', space=smem, size = 0x4, offset = 0x4, fixed_abs, tag = 'smem constant byte address 0x4 - core index']
  #allocation1 [shape = 'u32[144,128]{1,0:T(1,128)}', space=vmem, size = 0x12000, scoped, tag = 'internal scratch']
  #allocation2 [shape = 'f32[1,1]{1,0:T(1,128)S(6)}', space=smem, size = 0x200, scoped, tag = 'scoped memory for tpu_custom_call.1']
  %s0 = inlined_call_operand.vmem [shape: f32[8,16], index: 0, kind: input, shape index: {}]
  %s1 = inlined_call_operand.vmem [shape: f32[32,16], index: 1, kind: input, shape index: {}]
  %s2 = inlined_call_operand.vmem [shape: f32[32,1], index: 2, kind: input, shape index: {}]
  %s3 = inlined_call_operand.vmem [shape: f32[32,32], index: 3, kind: input, shape index: {}]
  %s4 = inlined_call_operand.vmem [shape: f32[32,1], index: 4, kind: input, shape index: {}]
  %s5 = inlined_call_operand.vmem [shape: f32[1,32], index: 5, kind: input, shape index: {}]
  %s6 = inlined_call_operand.<no memory space> [shape: f32[1,1], index: 6, kind: input, shape index: {}]
  %s7 = inlined_call_operand.hbm [shape: f32[1,128], index: 7, kind: output, shape index: {}]
  %s8 = sld [smem:[#allocation0]]
  $region38: #{tpu_custom_call.1} parent=0
    _
  %s10 = ssub.s32 1, %s8
  %s11 = scalar_select 0, %s10, %s8
  %12 = sst [smem:[#allocation2]] %s6
  $region1: #{tpu_custom_call.1} parent=0
    #allocation3 [shape = 'u8[512]{0}', space=vmem, size = 0x400, scoped, tag = 'output window, operand 0, single buffered']
    #allocation4 [shape = 's32[1]{0}', space=sflag, size = 0x4, scoped, tag = 'scoped memory for tpu_custom_call.1']
    %13 = vsyncpa [#allocation4], 0
    // Predicated region
    $region2: #{tpu_custom_call.1} parent=1 // pred_check
      _
    $region3: #{tpu_custom_call.1} parent=1 // pred_check_branch
      %15 = sbr.rel (0) target = $region5
    $region4: #{tpu_custom_call.1} parent=1 // pred_region
      _
    $region5: #{tpu_custom_call.1} parent=1 // pred_fallthru
      _
    // Predicated region
    $region6: #{tpu_custom_call.1} parent=1 // pred_check
      _
    $region7: #{tpu_custom_call.1} parent=1 // pred_check_branch
      %17 = sbr.rel (0) target = $region9
    $region8: #{tpu_custom_call.1} parent=1 // pred_region
      _
    $region9: #{tpu_custom_call.1} parent=1 // pred_fallthru
      _
    // Predicated region
    $region10: #{tpu_custom_call.1} parent=1 // pred_check
      _
    $region11: #{tpu_custom_call.1} parent=1 // pred_check_branch
      %19 = sbr.rel (0) target = $region13
    $region12: #{tpu_custom_call.1} parent=1 // pred_region
      _
    $region13: #{tpu_custom_call.1} parent=1 // pred_fallthru
      _
    // Predicated region
    $region14: #{tpu_custom_call.1} parent=1 // pred_check
      _
    $region15: #{tpu_custom_call.1} parent=1 // pred_check_branch
      %21 = sbr.rel (0) target = $region17
    $region16: #{tpu_custom_call.1} parent=1 // pred_region
      _
    $region17: #{tpu_custom_call.1} parent=1 // pred_fallthru
      _
    // Predicated region
    $region18: #{tpu_custom_call.1} parent=1 // pred_check
      _
    $region19: #{tpu_custom_call.1} parent=1 // pred_check_branch
      %23 = sbr.rel (0) target = $region21
    $region20: #{tpu_custom_call.1} parent=1 // pred_region
      _
    $region21: #{tpu_custom_call.1} parent=1 // pred_fallthru
      _
    // Predicated region
    $region22: #{tpu_custom_call.1} parent=1 // pred_check
      _
    $region23: #{tpu_custom_call.1} parent=1 // pred_check_branch
      %25 = sbr.rel (0) target = $region25
    $region24: #{tpu_custom_call.1} parent=1 // pred_region
      _
    $region25: #{tpu_custom_call.1} parent=1 // pred_fallthru
      _
    // Predicated region
    $region26: #{tpu_custom_call.1} parent=1 // pred_check
      _
    $region27: #{tpu_custom_call.1} parent=1 // pred_check_branch
      %27 = sbr.rel (0) target = $region29
    $region28: #{tpu_custom_call.1} parent=1 // pred_region
      _
    $region29: #{tpu_custom_call.1} parent=1 // pred_fallthru
      _
    %v28 = vld [vmem:[%s1] sm:$0xff]
    %v29 = vld [vmem:[%s1 + $0x8] sm:$0xff]
    %v30 = vld [vmem:[%s1 + $0x10] sm:$0xff]
    %v31 = vld [vmem:[%s1 + $0x18] sm:$0xff]
    %v32 = vld [vmem:[%s0] sm:$0xff]
    %v33 = vld [vmem:[%s0 + $0x8] sm:$0xff]
    %v34 = vld [vmem:[%s0 + $0x10] sm:$0xff]
    %v35 = vld [vmem:[%s0 + $0x18] sm:$0xff]
    %v36 = vld [vmem:[%s0 + $0x20] sm:$0xff]
    %v37 = vld [vmem:[%s0 + $0x28] sm:$0xff]
    %v38 = vld [vmem:[%s0 + $0x30] sm:$0xff]
    %v39 = vld [vmem:[%s0 + $0x38] sm:$0xff]
    %v40 = vld [vmem:[%s0 + $0x40] sm:$0xff]
    %v41 = vld [vmem:[%s0 + $0x48] sm:$0xff]
    %v42 = vld [vmem:[%s0 + $0x50] sm:$0xff]
    %v43 = vld [vmem:[%s0 + $0x58] sm:$0xff]
    %v44 = vld [vmem:[%s0 + $0x60] sm:$0xff]
    %v45 = vld [vmem:[%s0 + $0x68] sm:$0xff]
    %v46 = vld [vmem:[%s0 + $0x70] sm:$0xff]
    %v47 = vld [vmem:[%s0 + $0x78] sm:$0xff]
    %v48 = vld [vmem:[%s2] sm:$0xff]
    %v49 = vld [vmem:[%s2 + $0x8] sm:$0xff]
    %v50 = vld [vmem:[%s2 + $0x10] sm:$0xff]
    %v51 = vld [vmem:[%s2 + $0x18] sm:$0xff]
    %53 = vset.pattern.permute.xlu0 0
    %54 = vperm.xlu0 %53, %v48
    %v55 = vpop.permute.xlu0 %54
    %58 = vset.pattern.permute.xlu0 0
    %59 = vperm.xlu0 %58, %v49
    %v60 = vpop.permute.xlu0 %59
    %63 = vset.pattern.permute.xlu0 0
    %64 = vperm.xlu0 %63, %v50
    %v65 = vpop.permute.xlu0 %64
    %68 = vset.pattern.permute.xlu0 0
    %69 = vperm.xlu0 %68, %v51
    %v70 = vpop.permute.xlu0 %69
    %vm72 = vcmask 130048
    %v74 = vsel %vm72, %v28, 0
    %v77 = vsel %vm72, %v29, 0
    %v80 = vsel %vm72, %v30, 0
    %v83 = vsel %vm72, %v31, 0
    %v86 = vsel %vm72, %v32, 0
    %v89 = vsel %vm72, %v33, 0
    %v92 = vsel %vm72, %v34, 0
    %v95 = vsel %vm72, %v35, 0
    %v98 = vsel %vm72, %v36, 0
    %v101 = vsel %vm72, %v37, 0
    %v104 = vsel %vm72, %v38, 0
    %v107 = vsel %vm72, %v39, 0
    %v110 = vsel %vm72, %v40, 0
    %v113 = vsel %vm72, %v41, 0
    %v116 = vsel %vm72, %v42, 0
    %v119 = vsel %vm72, %v43, 0
    %v122 = vsel %vm72, %v44, 0
    %v125 = vsel %vm72, %v45, 0
    %v128 = vsel %vm72, %v46, 0
    %v131 = vsel %vm72, %v47, 0
    %133 = vmatprep.subr.mxu0 0.0
    %134 = vmatpush1.xpose.msra.mxu0 %v131
    %135 = vmatprep.subr.mxu0 0.0
    %136 = vmatpush1.xpose.msra.mxu0 %v128
    %137 = vmatprep.subr.mxu0 0.0
    %138 = vmatpush1.xpose.msra.mxu0 %v125
    %139 = vmatprep.subr.mxu0 0.0
    %140 = vmatpush1.xpose.msra.mxu0 %v122
    %141 = vmatprep.subr.mxu0 0.0
    %142 = vmatpush1.xpose.msra.mxu0 %v119
    %143 = vmatprep.subr.mxu0 0.0
    %144 = vmatpush1.xpose.msra.mxu0 %v116
    %145 = vmatprep.subr.mxu0 0.0
    %146 = vmatpush1.xpose.msra.mxu0 %v113
    %147 = vmatprep.subr.mxu0 0.0
    %148 = vmatpush1.xpose.msra.mxu0 %v110
    %149 = vmatprep.subr.mxu0 0.0
    %150 = vmatpush1.xpose.msra.mxu0 %v107
    %151 = vmatprep.subr.mxu0 0.0
    %152 = vmatpush1.xpose.msra.mxu0 %v104
    %153 = vmatprep.subr.mxu0 0.0
    %154 = vmatpush1.xpose.msra.mxu0 %v101
    %155 = vmatprep.subr.mxu0 0.0
    %156 = vmatpush1.xpose.msra.mxu0 %v98
    %157 = vmatprep.subr.mxu0 0.0
    %158 = vmatpush1.xpose.msra.mxu0 %v95
    %159 = vmatprep.subr.mxu0 0.0
    %160 = vmatpush1.xpose.msra.mxu0 %v92
    %161 = vmatprep.subr.mxu0 0.0
    %162 = vmatpush1.xpose.msra.mxu0 %v89
    %163 = vmatprep.subr.mxu0 0.0
    %164 = vmatpush1.xpose.msra.mxu0 %v86
    %165 = vmatprep.subr.mxu0 0.0
    %166 = vmatpush2.xpose.msra.mxu0 0.0
    %167 = vmatprep.subr.mxu0 0.0
    %168 = vmatpush2.xpose.msra.mxu0 0.0
    %169 = vmatprep.subr.mxu0 0.0
    %170 = vmatpush2.xpose.msra.mxu0 0.0
    %171 = vmatprep.subr.mxu0 0.0
    %172 = vmatpush2.xpose.msra.mxu0 0.0
    %173 = vmatprep.subr.mxu0 0.0
    %174 = vmatpush2.xpose.msra.mxu0 0.0
    %175 = vmatprep.subr.mxu0 0.0
    %176 = vmatpush2.xpose.msra.mxu0 0.0
    %177 = vmatprep.subr.mxu0 0.0
    %178 = vmatpush2.xpose.msra.mxu0 0.0
    %179 = vmatprep.subr.mxu0 0.0
    %180 = vmatpush2.xpose.msra.mxu0 0.0
    %181 = vmatprep.subr.mxu0 0.0
    %182 = vmatpush2.xpose.msra.mxu0 0.0
    %183 = vmatprep.subr.mxu0 0.0
    %184 = vmatpush2.xpose.msra.mxu0 0.0
    %185 = vmatprep.subr.mxu0 0.0
    %186 = vmatpush2.xpose.msra.mxu0 0.0
    %187 = vmatprep.subr.mxu0 0.0
    %188 = vmatpush2.xpose.msra.mxu0 0.0
    %189 = vmatprep.subr.mxu0 0.0
    %190 = vmatpush2.xpose.msra.mxu0 0.0
    %191 = vmatprep.subr.mxu0 0.0
    %192 = vmatpush2.xpose.msra.mxu0 0.0
    %193 = vmatprep.subr.mxu0 0.0
    %194 = vmatpush2.xpose.msra.mxu0 0.0
    %195 = vmatprep.subr.mxu0 0.0
    %196 = vmatpush2.xpose.msra.mxu0 0.0
    %197 = vmatprep.mubr.f32.mxu0 0.0
    %198 = vmatmul.mubr.f32.gmra.mxu0 %v74
    %v199 = vpop.f32.mrf.mxu0
    %v200 = vadd.f32 %v55, %v199
    %v201 = vpop.f32.mrf.mxu0
    %202 = vmatprep.mubr.f32.mxu0 0.0
    %203 = vmatmul.mubr.f32.gmra.mxu0 %v77
    %v204 = vpop.f32.mrf.mxu0
    %v205 = vadd.f32 %v60, %v204
    %v206 = vpop.f32.mrf.mxu0
    %207 = vmatprep.mubr.f32.mxu0 0.0
    %208 = vmatmul.mubr.f32.gmra.mxu0 %v80
    %v209 = vpop.f32.mrf.mxu0
    %v210 = vadd.f32 %v65, %v209
    %v211 = vpop.f32.mrf.mxu0
    %212 = vmatprep.mubr.f32.mxu0 0.0
    %213 = vmatmul.mubr.f32.gmra.mxu0 %v83
    %v214 = vpop.f32.mrf.mxu0
    %v215 = vadd.f32 %v70, %v214
    %v216 = vpop.f32.mrf.mxu0
    %217 = vdwg.mxu0
    %v218 = vmul.f32 %v200, 0.01
    %v219 = vmul.f32 %v205, 0.01
    %v220 = vmul.f32 %v210, 0.01
    %v221 = vmul.f32 %v215, 0.01
    %v222 = vmax.f32 %v200, %v218
    %v223 = vmax.f32 %v205, %v219
    %v224 = vmax.f32 %v210, %v220
    %v225 = vmax.f32 %v215, %v221
    %v226 = vld [vmem:[%s3] sm:$0xff]
    %v227 = vld [vmem:[%s3 + $0x8] sm:$0xff]
    %v228 = vld [vmem:[%s3 + $0x10] sm:$0xff]
    %v229 = vld [vmem:[%s3 + $0x18] sm:$0xff]
    %v230 = vld [vmem:[%s4] sm:$0xff]
    %v231 = vld [vmem:[%s4 + $0x8] sm:$0xff]
    %v232 = vld [vmem:[%s4 + $0x10] sm:$0xff]
    %v233 = vld [vmem:[%s4 + $0x18] sm:$0xff]
    %235 = vset.pattern.permute.xlu0 0
    %236 = vperm.xlu0 %235, %v230
    %v237 = vpop.permute.xlu0 %236
    %240 = vset.pattern.permute.xlu0 0
    %241 = vperm.xlu0 %240, %v231
    %v242 = vpop.permute.xlu0 %241
    %245 = vset.pattern.permute.xlu0 0
    %246 = vperm.xlu0 %245, %v232
    %v247 = vpop.permute.xlu0 %246
    %250 = vset.pattern.permute.xlu0 0
    %251 = vperm.xlu0 %250, %v233
    %v252 = vpop.permute.xlu0 %251
    %vm254 = vcmask 261120
    %v256 = vsel %vm254, %v226, 0
    %v259 = vsel %vm254, %v227, 0
    %v262 = vsel %vm254, %v228, 0
    %v265 = vsel %vm254, %v229, 0
    %267 = vmatprep.subr.mxu0 0.0
    %268 = vmatpush1.msra.mxu0 0.0
    %269 = vmatprep.subr.mxu0 0.0
    %270 = vmatpush1.msra.mxu0 0.0
    %271 = vmatprep.subr.mxu0 0.0
    %272 = vmatpush1.msra.mxu0 0.0
    %273 = vmatprep.subr.mxu0 0.0
    %274 = vmatpush1.msra.mxu0 0.0
    %275 = vmatprep.subr.mxu0 0.0
    %276 = vmatpush1.msra.mxu0 0.0
    %277 = vmatprep.subr.mxu0 0.0
    %278 = vmatpush1.msra.mxu0 0.0
    %279 = vmatprep.subr.mxu0 0.0
    %280 = vmatpush1.msra.mxu0 0.0
    %281 = vmatprep.subr.mxu0 0.0
    %282 = vmatpush1.msra.mxu0 0.0
    %283 = vmatprep.subr.mxu0 0.0
    %284 = vmatpush1.msra.mxu0 0.0
    %285 = vmatprep.subr.mxu0 0.0
    %286 = vmatpush1.msra.mxu0 0.0
    %287 = vmatprep.subr.mxu0 0.0
    %288 = vmatpush1.msra.mxu0 0.0
    %289 = vmatprep.subr.mxu0 0.0
    %290 = vmatpush1.msra.mxu0 0.0
    %291 = vmatprep.subr.mxu0 0.0
    %292 = vmatpush1.msra.mxu0 %v225
    %293 = vmatprep.subr.mxu0 0.0
    %294 = vmatpush1.msra.mxu0 %v224
    %295 = vmatprep.subr.mxu0 0.0
    %296 = vmatpush1.msra.mxu0 %v223
    %297 = vmatprep.subr.mxu0 0.0
    %298 = vmatpush1.msra.mxu0 %v222
    %299 = vmatprep.subr.mxu0 0.0
    %300 = vmatpush2.msra.mxu0 0.0
    %301 = vmatprep.subr.mxu0 0.0
    %302 = vmatpush2.msra.mxu0 0.0
    %303 = vmatprep.subr.mxu0 0.0
    %304 = vmatpush2.msra.mxu0 0.0
    %305 = vmatprep.subr.mxu0 0.0
    %306 = vmatpush2.msra.mxu0 0.0
    %307 = vmatprep.subr.mxu0 0.0
    %308 = vmatpush2.msra.mxu0 0.0
    %309 = vmatprep.subr.mxu0 0.0
    %310 = vmatpush2.msra.mxu0 0.0
    %311 = vmatprep.subr.mxu0 0.0
    %312 = vmatpush2.msra.mxu0 0.0
    %313 = vmatprep.subr.mxu0 0.0
    %314 = vmatpush2.msra.mxu0 0.0
    %315 = vmatprep.subr.mxu0 0.0
    %316 = vmatpush2.msra.mxu0 0.0
    %317 = vmatprep.subr.mxu0 0.0
    %318 = vmatpush2.msra.mxu0 0.0
    %319 = vmatprep.subr.mxu0 0.0
    %320 = vmatpush2.msra.mxu0 0.0
    %321 = vmatprep.subr.mxu0 0.0
    %322 = vmatpush2.msra.mxu0 0.0
    %323 = vmatprep.subr.mxu0 0.0
    %324 = vmatpush2.msra.mxu0 0.0
    %325 = vmatprep.subr.mxu0 0.0
    %326 = vmatpush2.msra.mxu0 0.0
    %327 = vmatprep.subr.mxu0 0.0
    %328 = vmatpush2.msra.mxu0 0.0
    %329 = vmatprep.subr.mxu0 0.0
    %330 = vmatpush2.msra.mxu0 0.0
    %331 = vmatprep.mubr.f32.mxu0 0.0
    %332 = vmatmul.mubr.f32.gmra.mxu0 %v256
    %v333 = vpop.f32.mrf.mxu0
    %v334 = vadd.f32 %v237, %v333
    %v335 = vpop.f32.mrf.mxu0
    %336 = vmatprep.mubr.f32.mxu0 0.0
    %337 = vmatmul.mubr.f32.gmra.mxu0 %v259
    %v338 = vpop.f32.mrf.mxu0
    %v339 = vadd.f32 %v242, %v338
    %v340 = vpop.f32.mrf.mxu0
    %341 = vmatprep.mubr.f32.mxu0 0.0
    %342 = vmatmul.mubr.f32.gmra.mxu0 %v262
    %v343 = vpop.f32.mrf.mxu0
    %v344 = vadd.f32 %v247, %v343
    %v345 = vpop.f32.mrf.mxu0
    %346 = vmatprep.mubr.f32.mxu0 0.0
    %347 = vmatmul.mubr.f32.gmra.mxu0 %v265
    %v348 = vpop.f32.mrf.mxu0
    %v349 = vadd.f32 %v252, %v348
    %v350 = vpop.f32.mrf.mxu0
    %351 = vdwg.mxu0
    %v352 = vmul.f32 %v334, 0.01
    %v353 = vmul.f32 %v339, 0.01
    %v354 = vmul.f32 %v344, 0.01
    %v355 = vmul.f32 %v349, 0.01
    %v356 = vmax.f32 %v334, %v352
    %v357 = vmax.f32 %v339, %v353
    %v358 = vmax.f32 %v344, %v354
    %v359 = vmax.f32 %v349, %v355
    %v360 = vld [vmem:[%s5] sm:$0x1]
    %s361 = sld [smem:[#allocation2]]
    %v362 = vstv %s361
    %v364 = vsel %vm254, %v360, 0
    %366 = vmatprep.subr.mxu0 0.0
    %367 = vmatpush1.msra.mxu0 0.0
    %368 = vmatprep.subr.mxu0 0.0
    %369 = vmatpush1.msra.mxu0 0.0
    %370 = vmatprep.subr.mxu0 0.0
    %371 = vmatpush1.msra.mxu0 0.0
    %372 = vmatprep.subr.mxu0 0.0
    %373 = vmatpush1.msra.mxu0 0.0
    %374 = vmatprep.subr.mxu0 0.0
    %375 = vmatpush1.msra.mxu0 0.0
    %376 = vmatprep.subr.mxu0 0.0
    %377 = vmatpush1.msra.mxu0 0.0
    %378 = vmatprep.subr.mxu0 0.0
    %379 = vmatpush1.msra.mxu0 0.0
    %380 = vmatprep.subr.mxu0 0.0
    %381 = vmatpush1.msra.mxu0 0.0
    %382 = vmatprep.subr.mxu0 0.0
    %383 = vmatpush1.msra.mxu0 0.0
    %384 = vmatprep.subr.mxu0 0.0
    %385 = vmatpush1.msra.mxu0 0.0
    %386 = vmatprep.subr.mxu0 0.0
    %387 = vmatpush1.msra.mxu0 0.0
    %388 = vmatprep.subr.mxu0 0.0
    %389 = vmatpush1.msra.mxu0 0.0
    %390 = vmatprep.subr.mxu0 0.0
    %391 = vmatpush1.msra.mxu0 %v359
    %392 = vmatprep.subr.mxu0 0.0
    %393 = vmatpush1.msra.mxu0 %v358
    %394 = vmatprep.subr.mxu0 0.0
    %395 = vmatpush1.msra.mxu0 %v357
    %396 = vmatprep.subr.mxu0 0.0
    %397 = vmatpush1.msra.mxu0 %v356
    %398 = vmatprep.subr.mxu0 0.0
    %399 = vmatpush2.msra.mxu0 0.0
    %400 = vmatprep.subr.mxu0 0.0
    %401 = vmatpush2.msra.mxu0 0.0
    %402 = vmatprep.subr.mxu0 0.0
    %403 = vmatpush2.msra.mxu0 0.0
    %404 = vmatprep.subr.mxu0 0.0
    %405 = vmatpush2.msra.mxu0 0.0
    %406 = vmatprep.subr.mxu0 0.0
    %407 = vmatpush2.msra.mxu0 0.0
    %408 = vmatprep.subr.mxu0 0.0
    %409 = vmatpush2.msra.mxu0 0.0
    %410 = vmatprep.subr.mxu0 0.0
    %411 = vmatpush2.msra.mxu0 0.0
    %412 = vmatprep.subr.mxu0 0.0
    %413 = vmatpush2.msra.mxu0 0.0
    %414 = vmatprep.subr.mxu0 0.0
    %415 = vmatpush2.msra.mxu0 0.0
    %416 = vmatprep.subr.mxu0 0.0
    %417 = vmatpush2.msra.mxu0 0.0
    %418 = vmatprep.subr.mxu0 0.0
    %419 = vmatpush2.msra.mxu0 0.0
    %420 = vmatprep.subr.mxu0 0.0
    %421 = vmatpush2.msra.mxu0 0.0
    %422 = vmatprep.subr.mxu0 0.0
    %423 = vmatpush2.msra.mxu0 0.0
    %424 = vmatprep.subr.mxu0 0.0
    %425 = vmatpush2.msra.mxu0 0.0
    %426 = vmatprep.subr.mxu0 0.0
    %427 = vmatpush2.msra.mxu0 0.0
    %428 = vmatprep.subr.mxu0 0.0
    %429 = vmatpush2.msra.mxu0 0.0
    %430 = vmatprep.mubr.f32.mxu0 0.0
    %431 = vmatmul.mubr.f32.gmra.mxu0 %v364
    %v432 = vpop.f32.mrf.mxu0
    %v433 = vadd.f32 %v362, %v432
    %v434 = vpop.f32.mrf.mxu0
    %435 = vdwg.mxu0
    %436 = vst [vmem:[#allocation3] sm:$0x1] %v433
    // Predicated region
    $region30: #{tpu_custom_call.1} parent=1 // pred_check
      _
    $region31: #{tpu_custom_call.1} parent=1 // pred_check_branch
      %438 = sbr.rel (0) target = $region33
    $region32: #{tpu_custom_call.1} parent=1 // pred_region
      %s440 = ssub.s32 16, 16
      %441 = vsyncadd [#allocation4], %s440
      %s443 = sshll.u32 [#allocation3], 4
      %s444 = int_to_ptr.vmem [resolvable:$true] %s443
      %446 = dma.vmem_to_hbm [thread:$0]  %s444, 16, %s7, [#allocation4]
    $region33: #{tpu_custom_call.1} parent=1 // pred_fallthru
      _
    // Predicated region
    $region34: #{tpu_custom_call.1} parent=1 // pred_check
      _
    $region35: #{tpu_custom_call.1} parent=1 // pred_check_branch
      %448 = sbr.rel (0) target = $region37
    $region36: #{tpu_custom_call.1} parent=1 // pred_region
      %449 = dma.done [#allocation4], 16
    $region37: #{tpu_custom_call.1} parent=1 // pred_fallthru
      _
    %450 = vsyncpa [#allocation4], 1

</llo_original>
